<compile_context>
chip_gen: v7x
topology: tpu7x:2x2x1
jax: 0.10.0
libtpu: 0.0.40
codegen_flags: <defaults>
</compile_context>

<pallas_src>
import jax
import jax.numpy as jnp
from jax.experimental import pallas as pl
from jax.experimental.pallas import tpu as pltpu


_LANES = 128
# One slab stream (1 input + 1 output, double buffered = 4 live tile buffers).
# 4096 x 128 f32 = 2 MiB per buffer -> 8 MiB VMEM: inside the 16 MiB scoped
# default on v5e and comfortably inside v6e/v7x, while amortising the ~0.35 us
# per-grid-step overhead to ~90%+ of the HBM roofline on all generations.
_MAX_TILE_ROWS = 4096
# Below this many rows a single block (grid of 1, no pipelining) is cheapest.
_SINGLE_BLOCK_ROWS = 1024


# ----------------------------- Pallas kernel --------------------------------

def _scalar_kernel(scale_ref, x_ref, o_ref):
    # scale_ref: SMEM (1,) float32
    # x_ref/o_ref: VMEM (tile_rows, 128) float32
    o_ref[...] = x_ref[...] * scale_ref[0]


def _round_up(x, m):
    return ((x + m - 1) // m) * m


def _scale_slab(slab, scale_arr):
    """Scale a lane-dense f32[rows, 128] slab by a scalar with one pallas_call."""
    rows = slab.shape[0]

    if rows <= _SINGLE_BLOCK_ROWS:
        # Block == whole array: always layout-legal, no pipeline bookkeeping.
        tile_rows = rows
    else:
        # At least two blocks so both v7x TensorCores get work on the
        # "parallel" grid axis; cap at the VMEM-friendly maximum tile.
        tile_rows = min(_MAX_TILE_ROWS, _round_up(pl.cdiv(rows, 2), 8))
    grid = (pl.cdiv(rows, tile_rows),)

    vspec = pl.BlockSpec((tile_rows, _LANES), lambda i: (i, 0))

    return pl.pallas_call(
        _scalar_kernel,
        out_shape=jax.ShapeDtypeStruct((rows, _LANES), jnp.float32),
        grid=grid,
        in_specs=[
            pl.BlockSpec(memory_space=pltpu.SMEM),  # scalar, untiled in SMEM
            vspec,
        ],
        out_specs=vspec,
        compiler_params=pltpu.CompilerParams(
            dimension_semantics=("parallel",),
            # Allow XLA to fuse the real/imag-split + reshape producer of the
            # slab into the kernel input instead of materialising it in HBM.
            # (input_output_aliases intentionally dropped: it conflicts with
            # input fusion and only saves allocation, not bandwidth.)
            allow_input_fusion=[False, True],
        ),
    )(scale_arr, slab)


# ------------------------------ forward pass ---------------------------------

@jax.jit
def _scalar_forward(x, scale_arr):
    # TODO(synk): Mosaic has no complex dtype and lax.bitcast_convert_type
    # rejects complex inputs, so the interleaved complex64 stream cannot be
    # fed to the kernel directly; we split into real/imag f32 planes and
    # recombine afterwards (the recombine fuses in XLA; the split is offered
    # to the kernel via allow_input_fusion).
    xr = jnp.real(x).astype(jnp.float32)
    xi = jnp.imag(x).astype(jnp.float32)
    shape = xr.shape
    n = xr.size
    s = scale_arr[0]

    tail = n % _LANES          # sub-lane-width remainder (static)
    bulk = n - tail            # lane-aligned bulk handled by Pallas

    xr_flat = xr.reshape(-1)
    xi_flat = xi.reshape(-1)

    if bulk:
        # Both planes share one lane-dense slab [2*bulk/128, 128]: one input
        # stream + one output stream instead of four.
        slab = jnp.concatenate([xr_flat[:bulk], xi_flat[:bulk]]).reshape(-1, _LANES)
        out_flat = _scale_slab(slab, scale_arr).reshape(-1)
        out_r = out_flat[:bulk]
        out_i = out_flat[bulk:]
    else:
        out_r = jnp.zeros((0,), jnp.float32)
        out_i = jnp.zeros((0,), jnp.float32)

    if tail:
        # <128-element tail: a trivial XLA multiply beats padding the whole
        # tensor through HBM twice just to make it 128-aligned.
        out_r = jnp.concatenate([out_r, xr_flat[bulk:] * s])
        out_i = jnp.concatenate([out_i, xi_flat[bulk:] * s])

    return jax.lax.complex(out_r.reshape(shape), out_i.reshape(shape))


# ----------------------------- Module wrapper --------------------------------

class ScalarPallas:
    """JAX/Pallas equivalent of the PyTorch `Scalar` module."""

    def __init__(self, init=1.0, train_scale=1.0):
        self.scale = float(train_scale)
        # nn.Parameter(torch.tensor([init])) -> deterministic init, shape (1,)
        self.weight = jnp.asarray([init], dtype=jnp.float32)

    def __call__(self, x):
        # x: complex array (e.g. NCHW).  complex128 inputs are narrowed to
        # complex64 (float32 planes), matching the float32 weight.
        scale_arr = (self.weight * self.scale).astype(jnp.float32)  # shape (1,)
        return _scalar_forward(x, scale_arr)


# ----------------------------------- main ------------------------------------

if __name__ == "__main__":
    key = jax.random.PRNGKey(0)
    kr, ki = jax.random.split(key)
    B, C, H, W = 2, 4, 16, 16  # NCHW, matches conv-style inputs in the model
    x_real = jax.random.normal(kr, (B, C, H, W), dtype=jnp.float32)
    x_imag = jax.random.normal(ki, (B, C, H, W), dtype=jnp.float32)
    x = jax.lax.complex(x_real, x_imag)  # complex64

    module = ScalarPallas(init=1.5, train_scale=0.5)
    out = jax.block_until_ready(module(x))

    # Reference check (plain JAX)
    s = 1.5 * 0.5
    ref = jax.lax.complex(x_real * s, x_imag * s)
    assert out.shape == x.shape and out.dtype == jnp.complex64
    assert jnp.allclose(out.real, ref.real, atol=1e-6)
    assert jnp.allclose(out.imag, ref.imag, atol=1e-6)

    print("KERNEL_OK")
</pallas_src>

<mosaic_0001>
module attributes {stable_mosaic.version = 11 : i64} {
  func.func @_scalar_kernel(%arg0: i32, %arg1: memref<1xf32, #tpu.memory_space<smem>>, %arg2: memref<32x128xf32, #tpu.memory_space<vmem>>, %arg3: memref<32x128xf32, #tpu.memory_space<vmem>>) attributes {dimension_semantics = [#tpu.dimension_semantics<parallel>], iteration_bounds = array<i64: 1>, scalar_prefetch = 0 : i64, scratch_operands = 0 : i64, tpu.core_type = #tpu.core_type<tc>, window_params = [{transform_indices = @transform_0, window_bounds = array<i64: 1>}, {transform_indices = @transform_1, window_bounds = array<i64: 32, 128>}, {transform_indices = @transform_2, window_bounds = array<i64: 32, 128>}]} {
    %c0 = arith.constant 0 : index
    %c0_0 = arith.constant 0 : index
    %0 = vector.load %arg2[%c0, %c0_0] : memref<32x128xf32, #tpu.memory_space<vmem>>, vector<32x128xf32>
    %c0_1 = arith.constant 0 : index
    %1 = memref.load %arg1[%c0_1] : memref<1xf32, #tpu.memory_space<smem>>
    %2 = vector.broadcast %1 : f32 to vector<32x128xf32>
    %3 = arith.mulf %0, %2 : vector<32x128xf32>
    %c0_2 = arith.constant 0 : index
    %c0_3 = arith.constant 0 : index
    %4 = vector.load %arg3[%c0_2, %c0_3] : memref<32x128xf32, #tpu.memory_space<vmem>>, vector<32x128xf32>
    tpu.vector_store %arg3[%c0_2, %c0_3], %3 {strides = array<i32>} : memref<32x128xf32, #tpu.memory_space<vmem>>, vector<32x128xf32>,
    return
  }
  func.func @transform_0(%arg0: i32) -> i32 {
    %c0_i32 = arith.constant 0 : i32
    %c0_i32_0 = arith.constant 0 : i32
    return %c0_i32 : i32
  }
  func.func @transform_1(%arg0: i32) -> (i32, i32) {
    %c0_i32 = arith.constant 0 : i32
    %c0_i32_0 = arith.constant 0 : i32
    return %arg0, %c0_i32 : i32, i32
  }
  func.func @transform_2(%arg0: i32) -> (i32, i32) {
    %c0_i32 = arith.constant 0 : i32
    %c0_i32_0 = arith.constant 0 : i32
    return %arg0, %c0_i32 : i32, i32
  }
}

</mosaic_0001>

<llo_original>
// kernel: custom-call
$region0: #{custom-call}
  %s0 = inlined_call_operand.hbm [shape: c64[2,4,16,16], index: 0, kind: input, shape index: {}]
  %s1 = inlined_call_operand.vmem [shape: f32[2,4,16,16], index: 1, kind: output, shape index: {}]
  $region1: #{custom-call} parent=0
    #allocation0 [shape = 's32[1]{0}', space=sflag, size = 0x4, scoped, tag = 'scoped memory for custom-call']
    %2 = vsyncpa [#allocation0], 0
    %s3 = sshll.u32 %s1, 4
    %s4 = int_to_ptr.vmem [resolvable:$true] %s3
    %6 = dma.hbm_to_vmem [thread:$0]  %s0, 2048, %s4, [#allocation0]
    %7 = dma.done [#allocation0], 2048
    %8 = vsyncpa [#allocation0], 1

// kernel: custom-call.1
$region0: #{custom-call.1}
  %s0 = inlined_call_operand.hbm [shape: c64[2,4,16,16], index: 0, kind: input, shape index: {}]
  %s1 = inlined_call_operand.vmem [shape: f32[2,4,16,16], index: 1, kind: output, shape index: {}]
  %s2 = scalar_lea.hbm %s0, 2048
  $region1: #{custom-call.1} parent=0
    #allocation0 [shape = 's32[1]{0}', space=sflag, size = 0x4, scoped, tag = 'scoped memory for custom-call.1']
    %3 = vsyncpa [#allocation0], 0
    %s4 = sshll.u32 %s1, 4
    %s5 = int_to_ptr.vmem [resolvable:$true] %s4
    %7 = dma.hbm_to_vmem [thread:$0]  %s2, 2048, %s5, [#allocation0]
    %8 = dma.done [#allocation0], 2048
    %9 = vsyncpa [#allocation0], 1

// kernel: custom-call.2
$region0: #{custom-call.2}
  %s0 = inlined_call_operand.vmem [shape: f32[2,4,16,16], index: 0, kind: input, shape index: {}]
  %s1 = inlined_call_operand.vmem [shape: f32[2,4,16,16], index: 1, kind: input, shape index: {}]
  %s2 = inlined_call_operand.hbm [shape: c64[2,4,16,16], index: 2, kind: output, shape index: {}]
  %s3 = scalar_lea.hbm %s2, 2048
  $region1: #{custom-call.2} parent=0
    #allocation0 [shape = 's32[1]{0}', space=sflag, size = 0x4, scoped, tag = 'scoped memory for custom-call.2']
    %4 = vsyncpa [#allocation0], 0
    %s5 = sshll.u32 %s0, 4
    %s6 = int_to_ptr.vmem [resolvable:$true] %s5
    %8 = dma.vmem_to_hbm [thread:$0]  %s6, 2048, %s2, [#allocation0]
    %9 = dma.done [#allocation0], 2048
    %10 = vsyncpa [#allocation0], 1
  $region2: #{custom-call.2} parent=0
    #allocation1 [shape = 's32[1]{0}', space=sflag, size = 0x4, scoped, tag = 'scoped memory for custom-call.2']
    %11 = vsyncpa [#allocation1], 0
    %s12 = sshll.u32 %s1, 4
    %s13 = int_to_ptr.vmem [resolvable:$true] %s12
    %15 = dma.vmem_to_hbm [thread:$0]  %s13, 2048, %s3, [#allocation1]
    %16 = dma.done [#allocation1], 2048
    %17 = vsyncpa [#allocation1], 1

// kernel: _scalar_forward.2
$region0: #{_scalar_forward.2}
  #allocation0 [shape = 'u32[]', space=smem, size = 0x4, offset = 0x4, fixed_abs, tag = 'smem constant byte address 0x4 - core index']
  #allocation1 [shape = 'u32[144,128]{1,0:T(1,128)}', space=vmem, size = 0x12000, scoped, tag = 'internal scratch']
  #allocation2 [shape = 'f32[1]{0:T(128)S(6)}', space=smem, size = 0x200, scoped, tag = 'scoped memory for _scalar_forward.2']
  #allocation3 [shape = 'u32[2048]{0}', space=vmem, size = 0x2000, scoped, tag = 'scoped memory for _scalar_forward.2']
  #allocation4 [shape = 'u32[2048]{0}', space=vmem, size = 0x2000, scoped, tag = 'scoped memory for _scalar_forward.2']
  #allocation5 [shape = 'u32[2048]{0}', space=vmem, size = 0x2000, scoped, tag = 'scoped memory for _scalar_forward.2']
  #allocation6 [shape = 'u32[2048]{0}', space=vmem, size = 0x2000, scoped, tag = 'scoped memory for _scalar_forward.2']
  #allocation7 [shape = 'u32[2048]{0}', space=vmem, size = 0x2000, scoped, tag = 'scoped memory for _scalar_forward.2']
  #allocation8 [shape = 'u32[2048]{0}', space=vmem, size = 0x2000, scoped, tag = 'scoped memory for _scalar_forward.2']
  #allocation9 [shape = 'u32[2048]{0}', space=vmem, size = 0x2000, scoped, tag = 'scoped memory for _scalar_forward.2']
  #allocation10 [shape = 'u32[2048]{0}', space=vmem, size = 0x2000, scoped, tag = 'scoped memory for _scalar_forward.2']
  #allocation11 [shape = 'u32[2048]{0}', space=vmem, size = 0x2000, scoped, tag = 'scoped memory for _scalar_forward.2']
  #allocation12 [shape = 'u32[2048]{0}', space=vmem, size = 0x2000, scoped, tag = 'scoped memory for _scalar_forward.2']
  %s0 = inlined_call_operand.<no memory space> [shape: f32[1], index: 0, kind: input, shape index: {}]
  %s1 = inlined_call_operand.vmem [shape: f32[16,128], index: 1, kind: input, shape index: {}]
  %s2 = inlined_call_operand.<no memory space> [shape: f32[], index: 2, kind: input, shape index: {}]
  %s3 = inlined_call_operand.vmem [shape: f32[16,128], index: 3, kind: input, shape index: {}]
  %s4 = inlined_call_operand.vmem [shape: f32[32,128], index: 4, kind: output, shape index: {}]
  %s5 = sld [smem:[#allocation0]]
  $region22: #{_scalar_forward.2} parent=0
    _
  %s7 = ssub.s32 1, %s5
  %s8 = scalar_select 0, %s7, %s5
  %9 = sst [smem:[#allocation2]] %s0
  %v10 = vstv %s2
  %v11 = vstv %s2
  $region1: #{_scalar_forward.2} parent=0
    #allocation13 [shape = 'u8[16384]{0}', space=vmem, size = 0x4000, dematerialized = true, scoped, tag = 'FusionAdapter Buffer %fusion.1 = f32[32,128]{1,0:T(8,128)} fusion(%param_1.6, %param_2.3, %param_3.1), kind=kLoop, calls=%fused_computation.1.clone, metadata={op_name="jit(_scalar_forward)/concatenate" stack_frame_id=12}']
    // Predicated region
    $region2: #{_scalar_forward.2} parent=1 // pred_check
      _
    $region3: #{_scalar_forward.2} parent=1 // pred_check_branch
      %13 = sbr.rel (0) target = $region5
    $region4: #{_scalar_forward.2} parent=1 // pred_region
      _
    $region5: #{_scalar_forward.2} parent=1 // pred_fallthru
      _
    // Predicated region
    $region6: #{_scalar_forward.2} parent=1 // pred_check
      _
    $region7: #{_scalar_forward.2} parent=1 // pred_check_branch
      %15 = sbr.rel (0) target = $region9
    $region8: #{_scalar_forward.2} parent=1 // pred_region
      %s16 = scalar_lea.vmem %s1, 4294967280
    $region9: #{_scalar_forward.2} parent=1 // pred_fallthru
      _
    // Predicated region
    $region10: #{_scalar_forward.2} parent=1 // pred_check
      _
    $region11: #{_scalar_forward.2} parent=1 // pred_check_branch
      %18 = sbr.rel (0) target = $region13
    $region12: #{_scalar_forward.2} parent=1 // pred_region
      _
    $region13: #{_scalar_forward.2} parent=1 // pred_fallthru
      _
    %s19 = scalar_lea.vmem %s1, 4294967280
    %s20 = scalar_lea.vmem %s1, 4294967280
    %v21 = vld [vmem:[%s3] sm:$0xff]
    %22 = xla_tuple %v21, %v10
    %23 = xla_tuple %22
    %v24 = vmax.f32 %v21, %v10
    %25 = xla_tuple %v24
    %27 = vst [vmem:[#allocation13] sm:$0xff] %v24
    %s28 = scalar_lea.vmem %s20, 8
    %s29 = scalar_lea.vmem %s3, 8
    %v30 = vld [vmem:[%s29] sm:$0xff]
    %31 = xla_tuple %v30, %v10
    %32 = xla_tuple %31
    %v33 = vmax.f32 %v30, %v10
    %34 = xla_tuple %v33
    %s35 = scalar_lea.vmem [#allocation13], 8
    %37 = vst [vmem:[%s35] sm:$0xff] %v33
    %s38 = scalar_lea.vmem %s20, 16
    %v39 = vld [vmem:[%s38] sm:$0xff]
    %40 = xla_tuple %v11, %v39
    %41 = xla_tuple %40
    %v42 = vmax.f32 %v11, %v39
    %43 = xla_tuple %v42
    %s44 = scalar_lea.vmem [#allocation13], 16
    %46 = vst [vmem:[%s44] sm:$0xff] %v42
    %s47 = scalar_lea.vmem %s20, 24
    %v48 = vld [vmem:[%s47] sm:$0xff]
    %49 = xla_tuple %v11, %v48
    %50 = xla_tuple %49
    %v51 = vmax.f32 %v11, %v48
    %52 = xla_tuple %v51
    %s53 = scalar_lea.vmem [#allocation13], 24
    %55 = vst [vmem:[%s53] sm:$0xff] %v51
    %v56 = vld [vmem:[#allocation13] sm:$0xff]
    %v57 = vld [vmem:[#allocation13 + $0x8] sm:$0xff]
    %v58 = vld [vmem:[#allocation13 + $0x10] sm:$0xff]
    %v59 = vld [vmem:[#allocation13 + $0x18] sm:$0xff]
    %s60 = sld [smem:[#allocation2]]
    %v61 = vstv %s60
    %v62 = vmul.f32 %v56, %v61
    %v63 = vmul.f32 %v57, %v61
    %v64 = vmul.f32 %v58, %v61
    %v65 = vmul.f32 %v59, %v61
    %66 = vst [vmem:[%s4] sm:$0xff] %v62
    %67 = vst [vmem:[%s4 + $0x8] sm:$0xff] %v63
    %68 = vst [vmem:[%s4 + $0x10] sm:$0xff] %v64
    %69 = vst [vmem:[%s4 + $0x18] sm:$0xff] %v65
    // Predicated region
    $region14: #{_scalar_forward.2} parent=1 // pred_check
      _
    $region15: #{_scalar_forward.2} parent=1 // pred_check_branch
      %71 = sbr.rel (0) target = $region17
    $region16: #{_scalar_forward.2} parent=1 // pred_region
      _
    $region17: #{_scalar_forward.2} parent=1 // pred_fallthru
      _
    // Predicated region
    $region18: #{_scalar_forward.2} parent=1 // pred_check
      _
    $region19: #{_scalar_forward.2} parent=1 // pred_check_branch
      %73 = sbr.rel (0) target = $region21
    $region20: #{_scalar_forward.2} parent=1 // pred_region
      _
    $region21: #{_scalar_forward.2} parent=1 // pred_fallthru
      _

</llo_original>
